<compile_context>
chip_gen: v7x
topology: tpu7x:2x2x1
jax: 0.10.0
libtpu: 0.0.40
codegen_flags: <defaults>
</compile_context>

<pallas_src>
import functools

import jax
import jax.numpy as jnp
from jax import lax
from jax.experimental import pallas as pl
from jax.experimental.pallas import tpu as pltpu

# Generation-aware VMEM budget for the fused whole-image path: keep well under
# v7x's 64 MiB physical VMEM (v5e/v6e have 128 MiB, so this is safe everywhere).
_FUSED_VMEM_BUDGET = 44 * 1024 * 1024
_FUSED_VMEM_LIMIT = 48 * 1024 * 1024


# ----------------------------- fused single pass ------------------------------
def _aff_fused_kernel(x_ref, r_ref,
                      w1l_ref, b1l_ref, w2l_ref, b2l_ref,
                      w1g_ref, b1g_ref, w2g_ref, b2g_ref,
                      o_ref, *, inv_hw, chunk):
    """Whole per-image slab resident in VMEM.

    x_ref/r_ref/o_ref: (C, HWp).  Phase A: pooled sum + global MLP.
    Phase B: local 1x1 convs + sigmoid + fuse, processed in lane chunks so the
    f32 intermediates stay small."""
    C, HWp = x_ref.shape
    n_chunks = HWp // chunk

    # ---- Phase A: spatial mean of xa = x + residual -> tiny global MLP ----
    def sum_body(i, acc):
        off = pl.multiple_of(i * chunk, 128)
        xa = (x_ref[:, pl.ds(off, chunk)].astype(jnp.float32)
              + r_ref[:, pl.ds(off, chunk)].astype(jnp.float32))
        return acc + jnp.sum(xa, axis=1, keepdims=True)

    acc = lax.fori_loop(0, n_chunks, sum_body, jnp.zeros((C, 1), jnp.float32))
    mean = acc * inv_hw                                                   # (C, 1)

    # conv1 (C -> Ci): broadcast-mul + cross-sublane reduce (tiny; no MXU)
    h = jnp.sum(w1g_ref[...] * mean, axis=0, keepdims=True) + b1g_ref[...]   # (1, Ci)
    h = jnp.maximum(h, 0.0)
    # conv2 (Ci -> C): broadcast-mul + cross-lane reduce
    xg = jnp.sum(w2g_ref[...] * h, axis=1, keepdims=True) + b2g_ref[...]     # (C, 1)

    # ---- Phase B: local branch + sigmoid + fuse over lane chunks ----
    w1l = w1l_ref[...]
    b1l = b1l_ref[...]
    w2l = w2l_ref[...]
    b2l = b2l_ref[...]

    def apply_body(i, carry):
        off = pl.multiple_of(i * chunk, 128)
        x = x_ref[:, pl.ds(off, chunk)].astype(jnp.float32)
        r = r_ref[:, pl.ds(off, chunk)].astype(jnp.float32)
        xa = x + r
        # conv1x1 (C->Ci) + folded BN + ReLU  (bf16 operands, f32 accumulation)
        z1 = jnp.dot(w1l, xa.astype(jnp.bfloat16),
                     preferred_element_type=jnp.float32) + b1l             # (Ci, chunk)
        z1 = jnp.maximum(z1, 0.0)
        # conv1x1 (Ci->C) + folded BN
        xl = jnp.dot(w2l, z1.astype(jnp.bfloat16),
                     preferred_element_type=jnp.float32) + b2l             # (C, chunk)
        # sigmoid with the divide on the EUP slot.
        wei = pl.reciprocal(1.0 + jnp.exp(-(xl + xg)), approx=True)
        # 2*x*wei + 2*r*(1-wei) == 2*(r + (x-r)*wei)
        o_ref[:, pl.ds(off, chunk)] = (2.0 * (r + (x - r) * wei)).astype(o_ref.dtype)
        return carry

    lax.fori_loop(0, n_chunks, apply_body, 0)


# --------------------- two-pass fallback: phase 1 (global) --------------------
def _aff_global_kernel(x_ref, r_ref, w1_ref, b1_ref, w2_ref, b2_ref,
                       xg_ref, acc_ref, *, inv_hw):
    """Accumulate spatial sum of xa = x + residual over lane tiles, then run
    the tiny global MLP.  x_ref/r_ref: (C, tM) tile.  xg_ref: (C, 1)."""
    t = pl.program_id(1)

    @pl.when(t == 0)
    def _():
        acc_ref[...] = jnp.zeros_like(acc_ref)

    xa = x_ref[...].astype(jnp.float32) + r_ref[...].astype(jnp.float32)  # (C, tM)
    acc_ref[...] += jnp.sum(xa, axis=1, keepdims=True)                    # (C, 1)

    @pl.when(t == pl.num_programs(1) - 1)
    def _():
        mean = acc_ref[...] * inv_hw                                      # (C, 1)
        h = jnp.sum(w1_ref[...] * mean, axis=0, keepdims=True) + b1_ref[...]  # (1, Ci)
        h = jnp.maximum(h, 0.0)
        g = jnp.sum(w2_ref[...] * h, axis=1, keepdims=True) + b2_ref[...]     # (C, 1)
        xg_ref[...] = g


# ---------------- two-pass fallback: phase 2 (local branch + fuse) ------------
def _aff_apply_kernel(x_ref, r_ref, xg_ref, w1_ref, b1_ref, w2_ref, b2_ref, o_ref):
    """Per lane-tile: local_att(xa), wei = sigmoid(xl + xg),
    out = 2*x*wei + 2*residual*(1-wei).  x_ref/r_ref/o_ref: (C, tM)."""
    x = x_ref[...].astype(jnp.float32)
    r = r_ref[...].astype(jnp.float32)
    xa = x + r

    z1 = jnp.dot(w1_ref[...], xa.astype(jnp.bfloat16),
                 preferred_element_type=jnp.float32) + b1_ref[...]        # (Ci, tM)
    z1 = jnp.maximum(z1, 0.0)
    xl = jnp.dot(w2_ref[...], z1.astype(jnp.bfloat16),
                 preferred_element_type=jnp.float32) + b2_ref[...]        # (C, tM)

    wei = pl.reciprocal(1.0 + jnp.exp(-(xl + xg_ref[...])), approx=True)
    o_ref[...] = (2.0 * (r + (x - r) * wei)).astype(o_ref.dtype)


# --------------------------------- wrapper ------------------------------------
def _fold_bn(w, b, gamma, beta, mean, var, eps):
    """Fold eval-mode BN into a 1x1 conv: returns (w_eff, b_eff)."""
    s = gamma / jnp.sqrt(var + eps)
    return w * s[:, None], s * (b - mean) + beta


def _pick_tile(hw, target):
    """Largest lane tile <= target that divides hw and is a multiple of 128.

    `hw` must already be a multiple of 128 (wrapper pads)."""
    t = max(128, min(target, hw))
    t -= t % 128
    while hw % t != 0:
        t -= 128
    return t


def aff_pallas(x, residual, p, eps=1e-5, tile=2048, force_two_pass=False):
    """x, residual: (N, C, H, W) float32 (NCHW, as in PyTorch). Returns NCHW."""
    N, C, H, W = x.shape
    HW = H * W
    # Pad the flattened spatial axis to a multiple of 128 -> lane-dense,
    # unmasked stores; padded zeros contribute nothing to the pooled sum
    # (inv_hw uses the true HW) and padded output columns are sliced away.
    HWp = ((HW + 127) // 128) * 128

    x3 = x.reshape(N, C, HW)
    r3 = residual.reshape(N, C, HW)
    if HWp != HW:
        pad = ((0, 0), (0, 0), (0, HWp - HW))
        x3 = jnp.pad(x3, pad)
        r3 = jnp.pad(r3, pad)

    # Fold BNs into the 1x1 convs.
    w1l, b1l = _fold_bn(p["w1l"], p["b1l"], p["bn1l_g"], p["bn1l_b"],
                        p["bn1l_m"], p["bn1l_v"], eps)
    w2l, b2l = _fold_bn(p["w2l"], p["b2l"], p["bn2l_g"], p["bn2l_b"],
                        p["bn2l_m"], p["bn2l_v"], eps)
    w1g, b1g = _fold_bn(p["w1g"], p["b1g"], p["bn1g_g"], p["bn1g_b"],
                        p["bn1g_m"], p["bn1g_v"], eps)
    w2g, b2g = _fold_bn(p["w2g"], p["b2g"], p["bn2g_g"], p["bn2g_b"],
                        p["bn2g_m"], p["bn2g_v"], eps)

    # Local-branch weights in bf16 for the MXU; biases f32 column vectors.
    w1l_bf = w1l.astype(jnp.bfloat16)          # (Ci, C)
    w2l_bf = w2l.astype(jnp.bfloat16)          # (C, Ci)
    b1l_c = b1l[:, None]                       # (Ci, 1)
    b2l_c = b2l[:, None]                       # (C, 1)

    # Global-branch weights kept f32 (tiny, done once per image on VPU/XLU).
    w1g_t = w1g.T                              # (C, Ci)
    b1g_r = b1g[None, :]                       # (1, Ci)
    w2g_m = w2g                                # (C, Ci)
    b2g_c = b2g[:, None]                       # (C, 1)

    tM = _pick_tile(HWp, tile)
    inv_hw = 1.0 / float(HW)

    # ---- choose fused single-pass vs two-pass fallback (VMEM budget) ----
    in_item = jnp.dtype(x3.dtype).itemsize
    out_item = jnp.dtype(x.dtype).itemsize
    slab_in = C * HWp * in_item
    slab_out = C * HWp * out_item
    # x,r double-buffered + out double-buffered + per-chunk f32 intermediates.
    fused_vmem = 2 * 2 * slab_in + 2 * slab_out + 10 * C * tM * 4 + (1 << 20)
    use_fused = (not force_two_pass) and (fused_vmem <= _FUSED_VMEM_BUDGET)

    if use_fused:
        slab_spec = pl.BlockSpec((None, C, HWp), lambda n: (n, 0, 0))

        def full2d(a):
            return pl.BlockSpec(a.shape, lambda n: (0, 0))

        out3 = pl.pallas_call(
            functools.partial(_aff_fused_kernel, inv_hw=inv_hw, chunk=tM),
            out_shape=jax.ShapeDtypeStruct((N, C, HWp), x.dtype),
            grid=(N,),
            in_specs=[slab_spec, slab_spec,
                      full2d(w1l_bf), full2d(b1l_c), full2d(w2l_bf), full2d(b2l_c),
                      full2d(w1g_t), full2d(b1g_r), full2d(w2g_m), full2d(b2g_c)],
            out_specs=slab_spec,
            compiler_params=pltpu.CompilerParams(
                dimension_semantics=("parallel",),
                vmem_limit_bytes=_FUSED_VMEM_LIMIT),
        )(x3, r3, w1l_bf, b1l_c, w2l_bf, b2l_c, w1g_t, b1g_r, w2g_m, b2g_c)
    else:
        # -------- two-pass fallback for very large feature maps --------
        nT = HWp // tM
        tile_spec = pl.BlockSpec((None, C, tM), lambda n, t: (n, 0, t))
        vec_spec = pl.BlockSpec((None, C, 1), lambda n, t: (n, 0, 0))

        def full2d(a):
            return pl.BlockSpec(a.shape, lambda n, t: (0, 0))

        # phase 1: pooled global branch -> xg (N, C, 1)
        xg = pl.pallas_call(
            functools.partial(_aff_global_kernel, inv_hw=inv_hw),
            out_shape=jax.ShapeDtypeStruct((N, C, 1), jnp.float32),
            grid=(N, nT),
            in_specs=[tile_spec, tile_spec,
                      full2d(w1g_t), full2d(b1g_r), full2d(w2g_m), full2d(b2g_c)],
            out_specs=vec_spec,
            scratch_shapes=[pltpu.VMEM((C, 1), jnp.float32)],
            compiler_params=pltpu.CompilerParams(
                dimension_semantics=("parallel", "arbitrary"),
                vmem_limit_bytes=32 * 1024 * 1024),
        )(x3, r3, w1g_t, b1g_r, w2g_m, b2g_c)

        # phase 2: local branch + sigmoid + fuse, tiled over spatial
        out3 = pl.pallas_call(
            _aff_apply_kernel,
            out_shape=jax.ShapeDtypeStruct((N, C, HWp), x.dtype),
            grid=(N, nT),
            in_specs=[tile_spec, tile_spec, vec_spec,
                      full2d(w1l_bf), full2d(b1l_c), full2d(w2l_bf), full2d(b2l_c)],
            out_specs=tile_spec,
            compiler_params=pltpu.CompilerParams(
                dimension_semantics=("parallel", "parallel"),
                vmem_limit_bytes=32 * 1024 * 1024),
        )(x3, r3, xg, w1l_bf, b1l_c, w2l_bf, b2l_c)

    if HWp != HW:
        out3 = out3[:, :, :HW]
    return out3.reshape(N, C, H, W)


# -------------------- pure-JAX reference (mirrors PyTorch) --------------------
def aff_ref(x, residual, p, eps=1e-5):
    def conv1x1(v, w, b):
        return jnp.einsum("nchw,oc->nohw", v, w) + b[None, :, None, None]

    def bn(v, g, b, m, var):
        s = g / jnp.sqrt(var + eps)
        return v * s[None, :, None, None] + (b - m * s)[None, :, None, None]

    xa = x + residual

    xl = bn(conv1x1(xa, p["w1l"], p["b1l"]),
            p["bn1l_g"], p["bn1l_b"], p["bn1l_m"], p["bn1l_v"])
    xl = jnp.maximum(xl, 0.0)
    xl = bn(conv1x1(xl, p["w2l"], p["b2l"]),
            p["bn2l_g"], p["bn2l_b"], p["bn2l_m"], p["bn2l_v"])

    g = jnp.mean(xa, axis=(2, 3), keepdims=True)              # AdaptiveAvgPool2d(1)
    xg = bn(conv1x1(g, p["w1g"], p["b1g"]),
            p["bn1g_g"], p["bn1g_b"], p["bn1g_m"], p["bn1g_v"])
    xg = jnp.maximum(xg, 0.0)
    xg = bn(conv1x1(xg, p["w2g"], p["b2g"]),
            p["bn2g_g"], p["bn2g_b"], p["bn2g_m"], p["bn2g_v"])

    wei = jax.nn.sigmoid(xl + xg)
    return 2.0 * x * wei + 2.0 * residual * (1.0 - wei)


def make_params(key, channels=64, r=4):
    ci = channels // r
    keys = iter(jax.random.split(key, 24))
    nrm = lambda shape, scale=0.1: scale * jax.random.normal(next(keys), shape, jnp.float32)
    uni = lambda shape: 0.5 + jax.random.uniform(next(keys), shape, dtype=jnp.float32)
    p = {}
    for tag, cin, cout in (("1l", channels, ci), ("2l", ci, channels),
                           ("1g", channels, ci), ("2g", ci, channels)):
        p["w" + tag] = nrm((cout, cin))
        p["b" + tag] = nrm((cout,))
        p["bn" + tag + "_g"] = 1.0 + nrm((cout,))
        p["bn" + tag + "_b"] = nrm((cout,))
        p["bn" + tag + "_m"] = nrm((cout,))
        p["bn" + tag + "_v"] = uni((cout,))
    return p


if __name__ == "__main__":
    key = jax.random.PRNGKey(0)
    kx, kr, kp = jax.random.split(key, 3)

    # AFF defaults: channels=64, r=4 -> inter_channels=16
    N, C, H, W = 2, 64, 16, 16
    x = jax.random.normal(kx, (N, C, H, W), jnp.float32)
    residual = jax.random.normal(kr, (N, C, H, W), jnp.float32)
    params = make_params(kp, C, r=4)

    ref = jax.block_until_ready(aff_ref(x, residual, params))

    # Fused single-pass path (default).  tile=128 so the toy shape (HW=256)
    # exercises the multi-chunk prologue/epilogue loops.
    fused_fn = jax.jit(functools.partial(aff_pallas, tile=128))
    out_fused = jax.block_until_ready(fused_fn(x, residual, params))

    # Two-pass fallback path (forced; used for very large feature maps).
    split_fn = jax.jit(functools.partial(aff_pallas, tile=128, force_two_pass=True))
    out_split = jax.block_until_ready(split_fn(x, residual, params))

    for out in (out_fused, out_split):
        assert out.shape == (N, C, H, W)
        err = float(jnp.max(jnp.abs(out - ref)))
        # bf16 MXU operands (f32 accumulation) + approx reciprocal => loose tol.
        assert jnp.allclose(out, ref, rtol=5e-2, atol=5e-2), err

    print("KERNEL_OK")
</pallas_src>

<mosaic_0001>
module attributes {stable_mosaic.version = 11 : i64} {
  func.func @_aff_fused_kernel(%arg0: i32, %arg1: memref<1x64x256xf32, #tpu.memory_space<vmem>>, %arg2: memref<1x64x256xf32, #tpu.memory_space<vmem>>, %arg3: memref<16x64xbf16, #tpu.memory_space<vmem>>, %arg4: memref<16x1xf32, #tpu.memory_space<vmem>>, %arg5: memref<64x16xbf16, #tpu.memory_space<vmem>>, %arg6: memref<64x1xf32, #tpu.memory_space<vmem>>, %arg7: memref<64x16xf32, #tpu.memory_space<vmem>>, %arg8: memref<1x16xf32, #tpu.memory_space<vmem>>, %arg9: memref<64x16xf32, #tpu.memory_space<vmem>>, %arg10: memref<64x1xf32, #tpu.memory_space<vmem>>, %arg11: memref<1x64x256xf32, #tpu.memory_space<vmem>>) attributes {dimension_semantics = [#tpu.dimension_semantics<parallel>], iteration_bounds = array<i64: 2>, scalar_prefetch = 0 : i64, scratch_operands = 0 : i64, tpu.core_type = #tpu.core_type<tc>, window_params = [{transform_indices = @transform_0, window_bounds = array<i64: 1, 64, 256>}, {transform_indices = @transform_1, window_bounds = array<i64: 1, 64, 256>}, {pipeline_mode = #tpu.pipeline_mode<synchronous>, transform_indices = @transform_2, window_bounds = array<i64: 16, 64>}, {pipeline_mode = #tpu.pipeline_mode<synchronous>, transform_indices = @transform_3, window_bounds = array<i64: 16, 1>}, {pipeline_mode = #tpu.pipeline_mode<synchronous>, transform_indices = @transform_4, window_bounds = array<i64: 64, 16>}, {pipeline_mode = #tpu.pipeline_mode<synchronous>, transform_indices = @transform_5, window_bounds = array<i64: 64, 1>}, {pipeline_mode = #tpu.pipeline_mode<synchronous>, transform_indices = @transform_6, window_bounds = array<i64: 64, 16>}, {pipeline_mode = #tpu.pipeline_mode<synchronous>, transform_indices = @transform_7, window_bounds = array<i64: 1, 16>}, {pipeline_mode = #tpu.pipeline_mode<synchronous>, transform_indices = @transform_8, window_bounds = array<i64: 64, 16>}, {pipeline_mode = #tpu.pipeline_mode<synchronous>, transform_indices = @transform_9, window_bounds = array<i64: 64, 1>}, {transform_indices = @transform_10, window_bounds = array<i64: 1, 64, 256>}]} {
    %cst = arith.constant 0.000000e+00 : f32
    %0 = vector.broadcast %cst : f32 to vector<64x1xf32>
    %c0_i32 = arith.constant 0 : i32
    %c2_i32 = arith.constant 2 : i32
    %1 = arith.addi %c0_i32, %c2_i32 : i32
    %c1_i32 = arith.constant 1 : i32
    %2 = scf.for %arg12 = %c0_i32 to %1 step %c1_i32 iter_args(%arg13 = %0) -> (vector<64x1xf32>)  : i32 {
      %c128_i32 = arith.constant 128 : i32
      %26 = arith.muli %arg12, %c128_i32 : i32
      %27 = tpu.assume_multiple %26, 128 : i32
      %c0_24 = arith.constant 0 : index
      %c0_25 = arith.constant 0 : index
      %28 = arith.index_cast %27 : i32 to index
      %29 = vector.load %arg1[%c0_24, %c0_25, %28] : memref<1x64x256xf32, #tpu.memory_space<vmem>>, vector<1x64x128xf32>
      %30 = vector.shape_cast %29 : vector<1x64x128xf32> to vector<64x128xf32>
      %c0_26 = arith.constant 0 : index
      %c0_27 = arith.constant 0 : index
      %31 = arith.index_cast %27 : i32 to index
      %32 = vector.load %arg2[%c0_26, %c0_27, %31] : memref<1x64x256xf32, #tpu.memory_space<vmem>>, vector<1x64x128xf32>
      %33 = vector.shape_cast %32 : vector<1x64x128xf32> to vector<64x128xf32>
      %34 = arith.addf %30, %33 : vector<64x128xf32>
      %cst_28 = arith.constant dense<0.000000e+00> : vector<64xf32>
      %35 = vector.multi_reduction <add>, %34, %cst_28 [1] : vector<64x128xf32> to vector<64xf32>
      %36 = vector.shape_cast %35 : vector<64xf32> to vector<64x1xf32>
      %37 = arith.addf %arg13, %36 : vector<64x1xf32>
      scf.yield %37 : vector<64x1xf32>
    }
    %c2_i32_0 = arith.constant 2 : i32
    %cst_1 = arith.constant 3.906250e-03 : f32
    %3 = vector.broadcast %cst_1 : f32 to vector<64x1xf32>
    %4 = arith.mulf %2, %3 : vector<64x1xf32>
    %c0 = arith.constant 0 : index
    %c0_2 = arith.constant 0 : index
    %5 = vector.load %arg7[%c0, %c0_2] : memref<64x16xf32, #tpu.memory_space<vmem>>, vector<64x16xf32>
    %6 = vector.broadcast %4 : vector<64x1xf32> to vector<64x16xf32>
    %7 = arith.mulf %5, %6 : vector<64x16xf32>
    %cst_3 = arith.constant dense<0.000000e+00> : vector<16xf32>
    %8 = vector.multi_reduction <add>, %7, %cst_3 [0] : vector<64x16xf32> to vector<16xf32>
    %9 = vector.shape_cast %8 : vector<16xf32> to vector<1x16xf32>
    %c0_4 = arith.constant 0 : index
    %c0_5 = arith.constant 0 : index
    %10 = vector.load %arg8[%c0_4, %c0_5] : memref<1x16xf32, #tpu.memory_space<vmem>>, vector<1x16xf32>
    %11 = arith.addf %9, %10 : vector<1x16xf32>
    %cst_6 = arith.constant 0.000000e+00 : f32
    %12 = vector.broadcast %cst_6 : f32 to vector<1x16xf32>
    %13 = arith.maximumf %11, %12 : vector<1x16xf32>
    %c0_7 = arith.constant 0 : index
    %c0_8 = arith.constant 0 : index
    %14 = vector.load %arg9[%c0_7, %c0_8] : memref<64x16xf32, #tpu.memory_space<vmem>>, vector<64x16xf32>
    %15 = vector.broadcast %13 : vector<1x16xf32> to vector<64x16xf32>
    %16 = arith.mulf %14, %15 : vector<64x16xf32>
    %cst_9 = arith.constant dense<0.000000e+00> : vector<64xf32>
    %17 = vector.multi_reduction <add>, %16, %cst_9 [1] : vector<64x16xf32> to vector<64xf32>
    %18 = vector.shape_cast %17 : vector<64xf32> to vector<64x1xf32>
    %c0_10 = arith.constant 0 : index
    %c0_11 = arith.constant 0 : index
    %19 = vector.load %arg10[%c0_10, %c0_11] : memref<64x1xf32, #tpu.memory_space<vmem>>, vector<64x1xf32>
    %20 = arith.addf %18, %19 : vector<64x1xf32>
    %c0_12 = arith.constant 0 : index
    %c0_13 = arith.constant 0 : index
    %21 = vector.load %arg3[%c0_12, %c0_13] : memref<16x64xbf16, #tpu.memory_space<vmem>>, vector<16x64xbf16>
    %c0_14 = arith.constant 0 : index
    %c0_15 = arith.constant 0 : index
    %22 = vector.load %arg4[%c0_14, %c0_15] : memref<16x1xf32, #tpu.memory_space<vmem>>, vector<16x1xf32>
    %c0_16 = arith.constant 0 : index
    %c0_17 = arith.constant 0 : index
    %23 = vector.load %arg5[%c0_16, %c0_17] : memref<64x16xbf16, #tpu.memory_space<vmem>>, vector<64x16xbf16>
    %c0_18 = arith.constant 0 : index
    %c0_19 = arith.constant 0 : index
    %24 = vector.load %arg6[%c0_18, %c0_19] : memref<64x1xf32, #tpu.memory_space<vmem>>, vector<64x1xf32>
    %c0_i32_20 = arith.constant 0 : i32
    %c2_i32_21 = arith.constant 2 : i32
    %25 = arith.addi %c0_i32_20, %c2_i32_21 : i32
    %c1_i32_22 = arith.constant 1 : i32
    scf.for %arg12 = %c0_i32_20 to %25 step %c1_i32_22  : i32 {
      %c128_i32 = arith.constant 128 : i32
      %26 = arith.muli %arg12, %c128_i32 : i32
      %27 = tpu.assume_multiple %26, 128 : i32
      %c0_24 = arith.constant 0 : index
      %c0_25 = arith.constant 0 : index
      %28 = arith.index_cast %27 : i32 to index
      %29 = vector.load %arg1[%c0_24, %c0_25, %28] : memref<1x64x256xf32, #tpu.memory_space<vmem>>, vector<1x64x128xf32>
      %30 = vector.shape_cast %29 : vector<1x64x128xf32> to vector<64x128xf32>
      %c0_26 = arith.constant 0 : index
      %c0_27 = arith.constant 0 : index
      %31 = arith.index_cast %27 : i32 to index
      %32 = vector.load %arg2[%c0_26, %c0_27, %31] : memref<1x64x256xf32, #tpu.memory_space<vmem>>, vector<1x64x128xf32>
      %33 = vector.shape_cast %32 : vector<1x64x128xf32> to vector<64x128xf32>
      %34 = arith.addf %30, %33 : vector<64x128xf32>
      %35 = arith.truncf %34 : vector<64x128xf32> to vector<64x128xbf16>
      %cst_28 = arith.constant dense<0.000000e+00> : vector<16x128xf32>
      %36 = tpu.matmul %21, %35, %cst_28 {dimension_numbers = #tpu.dot_dimension_numbers<[1], [0], [0], [1], [0, 0, 1, 1], [], []>} : vector<16x64xbf16>, vector<64x128xbf16>, vector<16x128xf32> -> vector<16x128xf32>
      %37 = vector.broadcast %22 : vector<16x1xf32> to vector<16x128xf32>
      %38 = arith.addf %36, %37 : vector<16x128xf32>
      %cst_29 = arith.constant 0.000000e+00 : f32
      %39 = vector.broadcast %cst_29 : f32 to vector<16x128xf32>
      %40 = arith.maximumf %38, %39 : vector<16x128xf32>
      %41 = arith.truncf %40 : vector<16x128xf32> to vector<16x128xbf16>
      %cst_30 = arith.constant dense<0.000000e+00> : vector<64x128xf32>
      %42 = tpu.matmul %23, %41, %cst_30 {dimension_numbers = #tpu.dot_dimension_numbers<[1], [0], [0], [1], [0, 0, 1, 1], [], []>} : vector<64x16xbf16>, vector<16x128xbf16>, vector<64x128xf32> -> vector<64x128xf32>
      %43 = vector.broadcast %24 : vector<64x1xf32> to vector<64x128xf32>
      %44 = arith.addf %42, %43 : vector<64x128xf32>
      %45 = vector.broadcast %20 : vector<64x1xf32> to vector<64x128xf32>
      %46 = arith.addf %44, %45 : vector<64x128xf32>
      %cst_31 = arith.constant 0.000000e+00 : f32
      %47 = vector.broadcast %cst_31 : f32 to vector<64x128xf32>
      %48 = arith.subf %47, %46 : vector<64x128xf32>
      %49 = math.exp %48 : vector<64x128xf32>
      %cst_32 = arith.constant 1.000000e+00 : f32
      %50 = vector.broadcast %cst_32 : f32 to vector<64x128xf32>
      %51 = arith.addf %50, %49 : vector<64x128xf32>
      %52 = tpu.reciprocal %51 {approx = true} : vector<64x128xf32> -> vector<64x128xf32>
      %53 = arith.subf %30, %33 : vector<64x128xf32>
      %54 = arith.mulf %53, %52 : vector<64x128xf32>
      %55 = arith.addf %33, %54 : vector<64x128xf32>
      %cst_33 = arith.constant 2.000000e+00 : f32
      %56 = vector.broadcast %cst_33 : f32 to vector<64x128xf32>
      %57 = arith.mulf %56, %55 : vector<64x128xf32>
      %c0_34 = arith.constant 0 : index
      %c0_35 = arith.constant 0 : index
      %58 = arith.index_cast %27 : i32 to index
      %59 = vector.load %arg11[%c0_34, %c0_35, %58] : memref<1x64x256xf32, #tpu.memory_space<vmem>>, vector<1x64x128xf32>
      %60 = vector.shape_cast %59 : vector<1x64x128xf32> to vector<64x128xf32>
      %61 = vector.shape_cast %57 : vector<64x128xf32> to vector<1x64x128xf32>
      tpu.vector_store %arg11[%c0_34, %c0_35, %58], %61 {strides = array<i32>} : memref<1x64x256xf32, #tpu.memory_space<vmem>>, vector<1x64x128xf32>,
    }
    %c2_i32_23 = arith.constant 2 : i32
    return
  }
  func.func @transform_0(%arg0: i32) -> (i32, i32, i32) {
    %c0_i32 = arith.constant 0 : i32
    %c0_i32_0 = arith.constant 0 : i32
    %c0_i32_1 = arith.constant 0 : i32
    return %arg0, %c0_i32, %c0_i32_0 : i32, i32, i32
  }
  func.func @transform_1(%arg0: i32) -> (i32, i32, i32) {
    %c0_i32 = arith.constant 0 : i32
    %c0_i32_0 = arith.constant 0 : i32
    %c0_i32_1 = arith.constant 0 : i32
    return %arg0, %c0_i32, %c0_i32_0 : i32, i32, i32
  }
  func.func @transform_2(%arg0: i32) -> (i32, i32) {
    %c0_i32 = arith.constant 0 : i32
    %c0_i32_0 = arith.constant 0 : i32
    %c0_i32_1 = arith.constant 0 : i32
    return %c0_i32, %c0_i32_0 : i32, i32
  }
  func.func @transform_3(%arg0: i32) -> (i32, i32) {
    %c0_i32 = arith.constant 0 : i32
    %c0_i32_0 = arith.constant 0 : i32
    %c0_i32_1 = arith.constant 0 : i32
    return %c0_i32, %c0_i32_0 : i32, i32
  }
  func.func @transform_4(%arg0: i32) -> (i32, i32) {
    %c0_i32 = arith.constant 0 : i32
    %c0_i32_0 = arith.constant 0 : i32
    %c0_i32_1 = arith.constant 0 : i32
    return %c0_i32, %c0_i32_0 : i32, i32
  }
  func.func @transform_5(%arg0: i32) -> (i32, i32) {
    %c0_i32 = arith.constant 0 : i32
    %c0_i32_0 = arith.constant 0 : i32
    %c0_i32_1 = arith.constant 0 : i32
    return %c0_i32, %c0_i32_0 : i32, i32
  }
  func.func @transform_6(%arg0: i32) -> (i32, i32) {
    %c0_i32 = arith.constant 0 : i32
    %c0_i32_0 = arith.constant 0 : i32
    %c0_i32_1 = arith.constant 0 : i32
    return %c0_i32, %c0_i32_0 : i32, i32
  }
  func.func @transform_7(%arg0: i32) -> (i32, i32) {
    %c0_i32 = arith.constant 0 : i32
    %c0_i32_0 = arith.constant 0 : i32
    %c0_i32_1 = arith.constant 0 : i32
    return %c0_i32, %c0_i32_0 : i32, i32
  }
  func.func @transform_8(%arg0: i32) -> (i32, i32) {
    %c0_i32 = arith.constant 0 : i32
    %c0_i32_0 = arith.constant 0 : i32
    %c0_i32_1 = arith.constant 0 : i32
    return %c0_i32, %c0_i32_0 : i32, i32
  }
  func.func @transform_9(%arg0: i32) -> (i32, i32) {
    %c0_i32 = arith.constant 0 : i32
    %c0_i32_0 = arith.constant 0 : i32
    %c0_i32_1 = arith.constant 0 : i32
    return %c0_i32, %c0_i32_0 : i32, i32
  }
  func.func @transform_10(%arg0: i32) -> (i32, i32, i32) {
    %c0_i32 = arith.constant 0 : i32
    %c0_i32_0 = arith.constant 0 : i32
    %c0_i32_1 = arith.constant 0 : i32
    return %arg0, %c0_i32, %c0_i32_0 : i32, i32, i32
  }
}

</mosaic_0001>

<llo_original>
// kernel: aff_pallas.1
$region0: #{aff_pallas.1}
  #allocation0 [shape = 'u32[]', space=smem, size = 0x4, offset = 0x4, fixed_abs, tag = 'smem constant byte address 0x4 - core index']
  #allocation1 [shape = 'u32[144,128]{1,0:T(1,128)}', space=vmem, size = 0x12000, scoped, tag = 'internal scratch']
  %s0 = inlined_call_operand.vmem [shape: f32[2,64,256], index: 0, kind: input, shape index: {}]
  %s1 = inlined_call_operand.vmem [shape: f32[2,64,256], index: 1, kind: input, shape index: {}]
  %s2 = inlined_call_operand.vmem [shape: bf16[16,64], index: 2, kind: input, shape index: {}]
  %s3 = inlined_call_operand.vmem [shape: f32[16,1], index: 3, kind: input, shape index: {}]
  %s4 = inlined_call_operand.vmem [shape: bf16[64,16], index: 4, kind: input, shape index: {}]
  %s5 = inlined_call_operand.vmem [shape: f32[64,1], index: 5, kind: input, shape index: {}]
  %s6 = inlined_call_operand.vmem [shape: f32[64,16], index: 6, kind: input, shape index: {}]
  %s7 = inlined_call_operand.vmem [shape: f32[1,16], index: 7, kind: input, shape index: {}]
  %s8 = inlined_call_operand.vmem [shape: f32[64,16], index: 8, kind: input, shape index: {}]
  %s9 = inlined_call_operand.vmem [shape: f32[64,1], index: 9, kind: input, shape index: {}]
  %s10 = inlined_call_operand.vmem [shape: f32[2,64,256], index: 10, kind: output, shape index: {}]
  %s11 = sld [smem:[#allocation0]]
  $region87: #{aff_pallas.1} parent=0
    _
  %s13 = ssub.s32 1, %s11
  %s14 = scalar_select 0, %s13, %s11
  loop: start=0, step=1, limit=4
  $region2: #{aff_pallas.1} parent=0 // loop_pre_header
    _
  $region3: #{aff_pallas.1} parent=0 // loop_header
    %s16 = sphi 0, %s20
    %p17 = scmp.ge.s32.totalorder %s16, 4
    %s26 = sphi 0, %s28
    %s29 = sphi 0, %s26
    %s30 = sphi 0, %s29
    %s46 = sphi 0, %s30
    %s52 = sphi 0, %s54
    %s55 = sphi 0, %s52
    %s56 = sphi 0, %s55
    %s72 = sphi 0, %s56
    %s76 = sphi 0, %s76
    %s78 = sphi 0, %s76
    %s79 = sphi 0, %s78
    %s93 = sphi 0, %s79
    %s97 = sphi 0, %s97
    %s99 = sphi 0, %s97
    %s100 = sphi 0, %s99
    %s114 = sphi 0, %s100
    %s118 = sphi 0, %s118
    %s120 = sphi 0, %s118
    %s121 = sphi 0, %s120
    %s135 = sphi 0, %s121
    %s139 = sphi 0, %s139
    %s141 = sphi 0, %s139
    %s142 = sphi 0, %s141
    %s156 = sphi 0, %s142
    %s160 = sphi 0, %s160
    %s162 = sphi 0, %s160
    %s163 = sphi 0, %s162
    %s177 = sphi 0, %s163
    %s181 = sphi 0, %s181
    %s183 = sphi 0, %s181
    %s184 = sphi 0, %s183
    %s198 = sphi 0, %s184
    %s202 = sphi 0, %s202
    %s204 = sphi 0, %s202
    %s205 = sphi 0, %s204
    %s219 = sphi 0, %s205
    %s223 = sphi 0, %s223
    %s225 = sphi 0, %s223
    %s226 = sphi 0, %s225
    %s240 = sphi 0, %s226
    %s246 = sphi 0, %s248
    %s249 = sphi 0, %s246
    %s250 = sphi 0, %s249
    %s266 = sphi 0, %s250
  $region4: #{aff_pallas.1} parent=0 // loop_header_branch
    %19 = sbr.rel (%p17) target = $region8
  $region5: #{aff_pallas.1} parent=0 // loop_body
    %s21 = ssub.s32 %s16, 1
    %s22 = ssub.s32 %s16, 2
    %s23 = sadd.s32 %s16, 1
    %s24 = ssub.s32 %s16, %s23
    %p25 = scmp.eq.s32.totalorder %s24, 0
    %s27 = sadd.s32 %s26, 1
    %s28 = scalar_select %p25, %s26, %s27
    %p31 = pneg %p25
    %p32 = scmp.eq.s32.totalorder %s16, 1
    %p33 = por %p31, %p32
    %p34 = scmp.ne.s32.totalorder %s26, %s29
    %p35 = scmp.eq.s32.totalorder %s16, 0
    %p36 = por %p34, %p35
    %p37 = scmp.ne.s32.totalorder %s26, %s29
    %p38 = scmp.eq.s32.totalorder %s21, 1
    %p39 = por %p37, %p38
    %p40 = scmp.ne.s32.totalorder %s29, %s30
    %p41 = scmp.eq.s32.totalorder %s21, 0
    %p42 = por %p40, %p41
    %p43 = scmp.ne.s32.totalorder %s29, %s30
    %p44 = scmp.eq.s32.totalorder %s22, 1
    %p45 = por %p43, %p44
    %p47 = scmp.ne.s32.totalorder %s30, %s46
    %p48 = scmp.eq.s32.totalorder %s22, 0
    %p49 = por %p47, %p48
    %s50 = ssub.s32 %s16, %s23
    %p51 = scmp.eq.s32.totalorder %s50, 0
    %s53 = sadd.s32 %s52, 1
    %s54 = scalar_select %p51, %s52, %s53
    %p57 = pneg %p51
    %p58 = scmp.eq.s32.totalorder %s16, 1
    %p59 = por %p57, %p58
    %p60 = scmp.ne.s32.totalorder %s52, %s55
    %p61 = scmp.eq.s32.totalorder %s16, 0
    %p62 = por %p60, %p61
    %p63 = scmp.ne.s32.totalorder %s52, %s55
    %p64 = scmp.eq.s32.totalorder %s21, 1
    %p65 = por %p63, %p64
    %p66 = scmp.ne.s32.totalorder %s55, %s56
    %p67 = scmp.eq.s32.totalorder %s21, 0
    %p68 = por %p66, %p67
    %p69 = scmp.ne.s32.totalorder %s55, %s56
    %p70 = scmp.eq.s32.totalorder %s22, 1
    %p71 = por %p69, %p70
    %p73 = scmp.ne.s32.totalorder %s56, %s72
    %p74 = scmp.eq.s32.totalorder %s22, 0
    %p75 = por %p73, %p74
    %s77 = sadd.s32 %s76, 1
    %p80 = scmp.eq.s32.totalorder %s16, 1
    %p81 = scmp.ne.s32.totalorder %s76, %s78
    %p82 = scmp.eq.s32.totalorder %s16, 0
    %p83 = por %p81, %p82
    %p84 = scmp.ne.s32.totalorder %s76, %s78
    %p85 = scmp.eq.s32.totalorder %s21, 1
    %p86 = por %p84, %p85
    %p87 = scmp.ne.s32.totalorder %s78, %s79
    %p88 = scmp.eq.s32.totalorder %s21, 0
    %p89 = por %p87, %p88
    %p90 = scmp.ne.s32.totalorder %s78, %s79
    %p91 = scmp.eq.s32.totalorder %s22, 1
    %p92 = por %p90, %p91
    %p94 = scmp.ne.s32.totalorder %s79, %s93
    %p95 = scmp.eq.s32.totalorder %s22, 0
    %p96 = por %p94, %p95
    %s98 = sadd.s32 %s97, 1
    %p101 = scmp.eq.s32.totalorder %s16, 1
    %p102 = scmp.ne.s32.totalorder %s97, %s99
    %p103 = scmp.eq.s32.totalorder %s16, 0
    %p104 = por %p102, %p103
    %p105 = scmp.ne.s32.totalorder %s97, %s99
    %p106 = scmp.eq.s32.totalorder %s21, 1
    %p107 = por %p105, %p106
    %p108 = scmp.ne.s32.totalorder %s99, %s100
    %p109 = scmp.eq.s32.totalorder %s21, 0
    %p110 = por %p108, %p109
    %p111 = scmp.ne.s32.totalorder %s99, %s100
    %p112 = scmp.eq.s32.totalorder %s22, 1
    %p113 = por %p111, %p112
    %p115 = scmp.ne.s32.totalorder %s100, %s114
    %p116 = scmp.eq.s32.totalorder %s22, 0
    %p117 = por %p115, %p116
    %s119 = sadd.s32 %s118, 1
    %p122 = scmp.eq.s32.totalorder %s16, 1
    %p123 = scmp.ne.s32.totalorder %s118, %s120
    %p124 = scmp.eq.s32.totalorder %s16, 0
    %p125 = por %p123, %p124
    %p126 = scmp.ne.s32.totalorder %s118, %s120
    %p127 = scmp.eq.s32.totalorder %s21, 1
    %p128 = por %p126, %p127
    %p129 = scmp.ne.s32.totalorder %s120, %s121
    %p130 = scmp.eq.s32.totalorder %s21, 0
    %p131 = por %p129, %p130
    %p132 = scmp.ne.s32.totalorder %s120, %s121
    %p133 = scmp.eq.s32.totalorder %s22, 1
    %p134 = por %p132, %p133
    %p136 = scmp.ne.s32.totalorder %s121, %s135
    %p137 = scmp.eq.s32.totalorder %s22, 0
    %p138 = por %p136, %p137
    %s140 = sadd.s32 %s139, 1
    %p143 = scmp.eq.s32.totalorder %s16, 1
    %p144 = scmp.ne.s32.totalorder %s139, %s141
    %p145 = scmp.eq.s32.totalorder %s16, 0
    %p146 = por %p144, %p145
    %p147 = scmp.ne.s32.totalorder %s139, %s141
    %p148 = scmp.eq.s32.totalorder %s21, 1
    %p149 = por %p147, %p148
    %p150 = scmp.ne.s32.totalorder %s141, %s142
    %p151 = scmp.eq.s32.totalorder %s21, 0
    %p152 = por %p150, %p151
    %p153 = scmp.ne.s32.totalorder %s141, %s142
    %p154 = scmp.eq.s32.totalorder %s22, 1
    %p155 = por %p153, %p154
    %p157 = scmp.ne.s32.totalorder %s142, %s156
    %p158 = scmp.eq.s32.totalorder %s22, 0
    %p159 = por %p157, %p158
    %s161 = sadd.s32 %s160, 1
    %p164 = scmp.eq.s32.totalorder %s16, 1
    %p165 = scmp.ne.s32.totalorder %s160, %s162
    %p166 = scmp.eq.s32.totalorder %s16, 0
    %p167 = por %p165, %p166
    %p168 = scmp.ne.s32.totalorder %s160, %s162
    %p169 = scmp.eq.s32.totalorder %s21, 1
    %p170 = por %p168, %p169
    %p171 = scmp.ne.s32.totalorder %s162, %s163
    %p172 = scmp.eq.s32.totalorder %s21, 0
    %p173 = por %p171, %p172
    %p174 = scmp.ne.s32.totalorder %s162, %s163
    %p175 = scmp.eq.s32.totalorder %s22, 1
    %p176 = por %p174, %p175
    %p178 = scmp.ne.s32.totalorder %s163, %s177
    %p179 = scmp.eq.s32.totalorder %s22, 0
    %p180 = por %p178, %p179
    %s182 = sadd.s32 %s181, 1
    %p185 = scmp.eq.s32.totalorder %s16, 1
    %p186 = scmp.ne.s32.totalorder %s181, %s183
    %p187 = scmp.eq.s32.totalorder %s16, 0
    %p188 = por %p186, %p187
    %p189 = scmp.ne.s32.totalorder %s181, %s183
    %p190 = scmp.eq.s32.totalorder %s21, 1
    %p191 = por %p189, %p190
    %p192 = scmp.ne.s32.totalorder %s183, %s184
    %p193 = scmp.eq.s32.totalorder %s21, 0
    %p194 = por %p192, %p193
    %p195 = scmp.ne.s32.totalorder %s183, %s184
    %p196 = scmp.eq.s32.totalorder %s22, 1
    %p197 = por %p195, %p196
    %p199 = scmp.ne.s32.totalorder %s184, %s198
    %p200 = scmp.eq.s32.totalorder %s22, 0
    %p201 = por %p199, %p200
    %s203 = sadd.s32 %s202, 1
    %p206 = scmp.eq.s32.totalorder %s16, 1
    %p207 = scmp.ne.s32.totalorder %s202, %s204
    %p208 = scmp.eq.s32.totalorder %s16, 0
    %p209 = por %p207, %p208
    %p210 = scmp.ne.s32.totalorder %s202, %s204
    %p211 = scmp.eq.s32.totalorder %s21, 1
    %p212 = por %p210, %p211
    %p213 = scmp.ne.s32.totalorder %s204, %s205
    %p214 = scmp.eq.s32.totalorder %s21, 0
    %p215 = por %p213, %p214
    %p216 = scmp.ne.s32.totalorder %s204, %s205
    %p217 = scmp.eq.s32.totalorder %s22, 1
    %p218 = por %p216, %p217
    %p220 = scmp.ne.s32.totalorder %s205, %s219
    %p221 = scmp.eq.s32.totalorder %s22, 0
    %p222 = por %p220, %p221
    %s224 = sadd.s32 %s223, 1
    %p227 = scmp.eq.s32.totalorder %s16, 1
    %p228 = scmp.ne.s32.totalorder %s223, %s225
    %p229 = scmp.eq.s32.totalorder %s16, 0
    %p230 = por %p228, %p229
    %p231 = scmp.ne.s32.totalorder %s223, %s225
    %p232 = scmp.eq.s32.totalorder %s21, 1
    %p233 = por %p231, %p232
    %p234 = scmp.ne.s32.totalorder %s225, %s226
    %p235 = scmp.eq.s32.totalorder %s21, 0
    %p236 = por %p234, %p235
    %p237 = scmp.ne.s32.totalorder %s225, %s226
    %p238 = scmp.eq.s32.totalorder %s22, 1
    %p239 = por %p237, %p238
    %p241 = scmp.ne.s32.totalorder %s226, %s240
    %p242 = scmp.eq.s32.totalorder %s22, 0
    %p243 = por %p241, %p242
    %s244 = ssub.s32 %s16, %s23
    %p245 = scmp.eq.s32.totalorder %s244, 0
    %s247 = sadd.s32 %s246, 1
    %s248 = scalar_select %p245, %s246, %s247
    %p251 = pneg %p245
    %p252 = scmp.eq.s32.totalorder %s16, 1
    %p253 = por %p251, %p252
    %p254 = scmp.ne.s32.totalorder %s246, %s249
    %p255 = scmp.eq.s32.totalorder %s16, 0
    %p256 = por %p254, %p255
    %p257 = scmp.ne.s32.totalorder %s246, %s249
    %p258 = scmp.eq.s32.totalorder %s21, 1
    %p259 = por %p257, %p258
    %p260 = scmp.ne.s32.totalorder %s249, %s250
    %p261 = scmp.eq.s32.totalorder %s21, 0
    %p262 = por %p260, %p261
    %p263 = scmp.ne.s32.totalorder %s249, %s250
    %p264 = scmp.eq.s32.totalorder %s22, 1
    %p265 = por %p263, %p264
    %p267 = scmp.ne.s32.totalorder %s250, %s266
    %p268 = scmp.eq.s32.totalorder %s22, 0
    %p269 = por %p267, %p268
    %p270 = scmp.le.s32.totalorder 1, %s16
    %p271 = scmp.lt.s32.totalorder %s16, 3
    %p272 = pnand %p270, %p271
    %p273 = pneg %p272
    // Predicated region
    $region9: #{aff_pallas.1} parent=5 // pred_check
      _
    $region10: #{aff_pallas.1} parent=5 // pred_check_branch
      %275 = sbr.rel (%p272) target = $region12
    $region11: #{aff_pallas.1} parent=5 // pred_region
      %s276 = ssub.s32 %s16, 1
      // Predicated region
      $region13: #{aff_pallas.1} parent=11 // pred_check
        %p277 = pneg %p89
      $region14: #{aff_pallas.1} parent=11 // pred_check_branch
        %279 = sbr.rel (%p277) target = $region16
      $region15: #{aff_pallas.1} parent=11 // pred_region
        _
      $region16: #{aff_pallas.1} parent=11 // pred_fallthru
        _
      // Predicated region
      $region17: #{aff_pallas.1} parent=11 // pred_check
        %p280 = pneg %p110
      $region18: #{aff_pallas.1} parent=11 // pred_check_branch
        %282 = sbr.rel (%p280) target = $region20
      $region19: #{aff_pallas.1} parent=11 // pred_region
        _
      $region20: #{aff_pallas.1} parent=11 // pred_fallthru
        _
      // Predicated region
      $region21: #{aff_pallas.1} parent=11 // pred_check
        %p283 = pneg %p131
      $region22: #{aff_pallas.1} parent=11 // pred_check_branch
        %285 = sbr.rel (%p283) target = $region24
      $region23: #{aff_pallas.1} parent=11 // pred_region
        _
      $region24: #{aff_pallas.1} parent=11 // pred_fallthru
        _
      // Predicated region
      $region25: #{aff_pallas.1} parent=11 // pred_check
        %p286 = pneg %p152
      $region26: #{aff_pallas.1} parent=11 // pred_check_branch
        %288 = sbr.rel (%p286) target = $region28
      $region27: #{aff_pallas.1} parent=11 // pred_region
        _
      $region28: #{aff_pallas.1} parent=11 // pred_fallthru
        _
      // Predicated region
      $region29: #{aff_pallas.1} parent=11 // pred_check
        %p289 = pneg %p173
      $region30: #{aff_pallas.1} parent=11 // pred_check_branch
        %291 = sbr.rel (%p289) target = $region32
      $region31: #{aff_pallas.1} parent=11 // pred_region
        _
      $region32: #{aff_pallas.1} parent=11 // pred_fallthru
        _
      // Predicated region
      $region33: #{aff_pallas.1} parent=11 // pred_check
        %p292 = pneg %p194
      $region34: #{aff_pallas.1} parent=11 // pred_check_branch
        %294 = sbr.rel (%p292) target = $region36
      $region35: #{aff_pallas.1} parent=11 // pred_region
        _
      $region36: #{aff_pallas.1} parent=11 // pred_fallthru
        _
      // Predicated region
      $region37: #{aff_pallas.1} parent=11 // pred_check
        %p295 = pneg %p215
      $region38: #{aff_pallas.1} parent=11 // pred_check_branch
        %297 = sbr.rel (%p295) target = $region40
      $region39: #{aff_pallas.1} parent=11 // pred_region
        _
      $region40: #{aff_pallas.1} parent=11 // pred_fallthru
        _
      // Predicated region
      $region41: #{aff_pallas.1} parent=11 // pred_check
        %p298 = pneg %p236
      $region42: #{aff_pallas.1} parent=11 // pred_check_branch
        %300 = sbr.rel (%p298) target = $region44
      $region43: #{aff_pallas.1} parent=11 // pred_region
        _
      $region44: #{aff_pallas.1} parent=11 // pred_fallthru
        _
    $region12: #{aff_pallas.1} parent=5 // pred_fallthru
      _
    %p301 = scmp.lt.s32.totalorder %s16, 2
    // Predicated region
    $region45: #{aff_pallas.1} parent=5 // pred_check
      %p302 = pneg %p301
    $region46: #{aff_pallas.1} parent=5 // pred_check_branch
      %304 = sbr.rel (%p302) target = $region48
    $region47: #{aff_pallas.1} parent=5 // pred_region
      // Predicated region
      $region49: #{aff_pallas.1} parent=47 // pred_check
        %p305 = pneg %p36
      $region50: #{aff_pallas.1} parent=47 // pred_check_branch
        %307 = sbr.rel (%p305) target = $region52
      $region51: #{aff_pallas.1} parent=47 // pred_region
        %p308 = scmp.lt.s32.totalorder %s16, 1
        %s309 = scalar_select %p308, %s16, 1
        %s310 = smul.addr %s309, 16
        %s311 = smul.addr %s310, 8
        %s312 = scalar_lea.vmem %s0, %s311
      $region52: #{aff_pallas.1} parent=47 // pred_fallthru
        _
      // Predicated region
      $region53: #{aff_pallas.1} parent=47 // pred_check
        %p313 = pneg %p62
      $region54: #{aff_pallas.1} parent=47 // pred_check_branch
        %315 = sbr.rel (%p313) target = $region56
      $region55: #{aff_pallas.1} parent=47 // pred_region
        %p316 = scmp.lt.s32.totalorder %s16, 1
        %s317 = scalar_select %p316, %s16, 1
        %s318 = smul.addr %s317, 16
        %s319 = smul.addr %s318, 8
        %s320 = scalar_lea.vmem %s1, %s319
      $region56: #{aff_pallas.1} parent=47 // pred_fallthru
        _
    $region48: #{aff_pallas.1} parent=5 // pred_fallthru
      _
    %p321 = scmp.le.s32.totalorder 1, %s16
    %p322 = scmp.lt.s32.totalorder %s16, 3
    %p323 = pnand %p321, %p322
    %p324 = pneg %p323
    // Predicated region
    $region57: #{aff_pallas.1} parent=5 // pred_check
      _
    $region58: #{aff_pallas.1} parent=5 // pred_check_branch
      %326 = sbr.rel (%p323) target = $region60
    $region59: #{aff_pallas.1} parent=5 // pred_region
      %s327 = ssub.s32 %s16, 1
      %p328 = scmp.lt.s32.totalorder %s21, 1
      %s329 = scalar_select %p328, %s21, 1
      %s330 = smul.addr %s329, 16
      %s331 = smul.addr %s330, 8
      %s332 = scalar_lea.vmem %s0, %s331
      %p333 = pneg %p42
      %p334 = pneg %p39
      %p335 = scmp.lt.s32.totalorder %s21, 1
      %s336 = scalar_select %p335, %s21, 1
      %s337 = smul.addr %s336, 16
      %s338 = smul.addr %s337, 8
      %s339 = scalar_lea.vmem %s1, %s338
      %p340 = pneg %p68
      %p341 = pneg %p65
      %p342 = pneg %p89
      %p343 = pneg %p86
      %p344 = pneg %p110
      %p345 = pneg %p107
      %p346 = pneg %p131
      %p347 = pneg %p128
      %p348 = pneg %p152
      %p349 = pneg %p149
      %p350 = pneg %p173
      %p351 = pneg %p170
      %p352 = pneg %p194
      %p353 = pneg %p191
      %p354 = pneg %p215
      %p355 = pneg %p212
      %p356 = pneg %p236
      %p357 = pneg %p233
      %p358 = pneg %p262
      %p359 = pneg %p259
      %p360 = scmp.lt.s32.totalorder %s21, 1
      %s361 = scalar_select %p360, %s21, 1
      %s362 = smul.addr %s361, 16
      %s363 = smul.addr %s362, 8
      %s364 = scalar_lea.vmem %s10, %s363
      %p365 = scmp.lt.s32.totalorder %s21, 1
      %s366 = scalar_select %p365, %s21, 1
      %s367 = smul.addr %s366, 16
      %s368 = smul.addr %s367, 8
      %s369 = scalar_lea.vmem %s0, %s368
      %p370 = scmp.lt.s32.totalorder %s21, 1
      %s371 = scalar_select %p370, %s21, 1
      %s372 = smul.addr %s371, 16
      %s373 = smul.addr %s372, 8
      %s374 = scalar_lea.vmem %s1, %s373
      %p375 = scmp.lt.s32.totalorder %s21, 1
      %s376 = scalar_select %p375, %s21, 1
      %s377 = smul.addr %s376, 16
      %s378 = smul.addr %s377, 8
      %s379 = scalar_lea.vmem %s10, %s378
      loop: start=0, step=1, limit=2
      $region61: #{aff_pallas.1} parent=59 // loop_pre_header
        _
      $region62: #{aff_pallas.1} parent=59 // loop_header
        %s382 = sphi 0, %s386
        %p383 = scmp.ge.s32.totalorder %s382, 2
        %v387 = vphi 0.0, %v442
        %v388 = vphi 0.0, %v443
        %v389 = vphi 0.0, %v444
        %v390 = vphi 0.0, %v445
        %v391 = vphi 0.0, %v446
        %v392 = vphi 0.0, %v447
        %v393 = vphi 0.0, %v448
        %v394 = vphi 0.0, %v449
      $region63: #{aff_pallas.1} parent=59 // loop_header_branch
        %385 = sbr.rel (%p383) target = $region67
      $region64: #{aff_pallas.1} parent=59 // loop_body
        %s395 = smul.u32 %s382, 128
        %s396 = sshra.s32 %s395, 7
        %s397 = sand.u32 %s395, 127
        %s398 = smul.addr %s396, 8
        %s399 = scalar_lea.vmem %s369, %s398
        %v400 = vld [vmem:[%s399] sm:$0xff]
        %v401 = vld [vmem:[%s399 + $0x10] sm:$0xff]
        %v402 = vld [vmem:[%s399 + $0x20] sm:$0xff]
        %v403 = vld [vmem:[%s399 + $0x30] sm:$0xff]
        %v404 = vld [vmem:[%s399 + $0x40] sm:$0xff]
        %v405 = vld [vmem:[%s399 + $0x50] sm:$0xff]
        %v406 = vld [vmem:[%s399 + $0x60] sm:$0xff]
        %v407 = vld [vmem:[%s399 + $0x70] sm:$0xff]
        %s408 = smul.addr %s396, 8
        %s409 = scalar_lea.vmem %s374, %s408
        %v410 = vld [vmem:[%s409] sm:$0xff]
        %v411 = vld [vmem:[%s409 + $0x10] sm:$0xff]
        %v412 = vld [vmem:[%s409 + $0x20] sm:$0xff]
        %v413 = vld [vmem:[%s409 + $0x30] sm:$0xff]
        %v414 = vld [vmem:[%s409 + $0x40] sm:$0xff]
        %v415 = vld [vmem:[%s409 + $0x50] sm:$0xff]
        %v416 = vld [vmem:[%s409 + $0x60] sm:$0xff]
        %v417 = vld [vmem:[%s409 + $0x70] sm:$0xff]
        %v418 = vadd.f32 %v400, %v410
        %v419 = vadd.f32 %v401, %v411
        %v420 = vadd.f32 %v402, %v412
        %v421 = vadd.f32 %v403, %v413
        %v422 = vadd.f32 %v404, %v414
        %v423 = vadd.f32 %v405, %v415
        %v424 = vadd.f32 %v406, %v416
        %v425 = vadd.f32 %v407, %v417
        %426 = vadd.xlane.f32.xlu0 %v418
        %v427 = vpop.xlane.xlu0 %426
        %428 = vadd.xlane.f32.xlu0 %v419
        %v429 = vpop.xlane.xlu0 %428
        %430 = vadd.xlane.f32.xlu0 %v420
        %v431 = vpop.xlane.xlu0 %430
        %432 = vadd.xlane.f32.xlu0 %v421
        %v433 = vpop.xlane.xlu0 %432
        %434 = vadd.xlane.f32.xlu0 %v422
        %v435 = vpop.xlane.xlu0 %434
        %436 = vadd.xlane.f32.xlu0 %v423
        %v437 = vpop.xlane.xlu0 %436
        %438 = vadd.xlane.f32.xlu0 %v424
        %v439 = vpop.xlane.xlu0 %438
        %440 = vadd.xlane.f32.xlu0 %v425
        %v441 = vpop.xlane.xlu0 %440
        %v442 = vadd.f32 %v387, %v427
        %v443 = vadd.f32 %v388, %v429
        %v444 = vadd.f32 %v389, %v431
        %v445 = vadd.f32 %v390, %v433
        %v446 = vadd.f32 %v391, %v435
        %v447 = vadd.f32 %v392, %v437
        %v448 = vadd.f32 %v393, %v439
        %v449 = vadd.f32 %v394, %v441
      $region65: #{aff_pallas.1} parent=59 // loop_footer
        %s386 = sadd.s32 1, %s382
      $region66: #{aff_pallas.1} parent=59 // loop_footer_branch
        %381 = sbr.rel target = $region62
      $region67: #{aff_pallas.1} parent=59 // loop_exit
        _
      %v450 = vmul.f32 %v387, 0.00390625
      %v451 = vmul.f32 %v388, 0.00390625
      %v452 = vmul.f32 %v389, 0.00390625
      %v453 = vmul.f32 %v390, 0.00390625
      %v454 = vmul.f32 %v391, 0.00390625
      %v455 = vmul.f32 %v392, 0.00390625
      %v456 = vmul.f32 %v393, 0.00390625
      %v457 = vmul.f32 %v394, 0.00390625
      %v458 = vld [vmem:[%s6] sm:$0xff]
      %v459 = vld [vmem:[%s6 + $0x8] sm:$0xff]
      %v460 = vld [vmem:[%s6 + $0x10] sm:$0xff]
      %v461 = vld [vmem:[%s6 + $0x18] sm:$0xff]
      %v462 = vld [vmem:[%s6 + $0x20] sm:$0xff]
      %v463 = vld [vmem:[%s6 + $0x28] sm:$0xff]
      %v464 = vld [vmem:[%s6 + $0x30] sm:$0xff]
      %v465 = vld [vmem:[%s6 + $0x38] sm:$0xff]
      %v466 = vmul.f32 %v458, %v450
      %v467 = vmul.f32 %v459, %v451
      %v468 = vmul.f32 %v460, %v452
      %v469 = vmul.f32 %v461, %v453
      %v470 = vmul.f32 %v462, %v454
      %v471 = vmul.f32 %v463, %v455
      %v472 = vmul.f32 %v464, %v456
      %v473 = vmul.f32 %v465, %v457
      %vm474 = vcmask 130048
      %v475 = vsel %vm474, %v466, 0.0
      %v476 = vsel %vm474, %v467, 0.0
      %v477 = vadd.f32 %v475, %v476
      %v478 = vsel %vm474, %v468, 0.0
      %v479 = vadd.f32 %v477, %v478
      %v480 = vsel %vm474, %v469, 0.0
      %v481 = vadd.f32 %v479, %v480
      %v482 = vsel %vm474, %v470, 0.0
      %v483 = vadd.f32 %v481, %v482
      %v484 = vsel %vm474, %v471, 0.0
      %v485 = vadd.f32 %v483, %v484
      %v486 = vsel %vm474, %v472, 0.0
      %v487 = vadd.f32 %v485, %v486
      %v488 = vsel %vm474, %v473, 0.0
      %v489 = vadd.f32 %v487, %v488
      %v490 = vrot.slane %v489, 4
      %v491 = vadd.f32 %v489, %v490
      %v492 = vrot.slane %v491, 2
      %v493 = vadd.f32 %v491, %v492
      %v494 = vrot.slane %v493, 1
      %v495 = vadd.f32 %v493, %v494
      %v496 = vld [vmem:[%s7] sm:$0x1]
      %v497 = vadd.f32 %v495, %v496
      %v498 = vmax.f32 %v497, 0.0
      %v499 = vld [vmem:[%s8] sm:$0xff]
      %v500 = vld [vmem:[%s8 + $0x8] sm:$0xff]
      %v501 = vld [vmem:[%s8 + $0x10] sm:$0xff]
      %v502 = vld [vmem:[%s8 + $0x18] sm:$0xff]
      %v503 = vld [vmem:[%s8 + $0x20] sm:$0xff]
      %v504 = vld [vmem:[%s8 + $0x28] sm:$0xff]
      %v505 = vld [vmem:[%s8 + $0x30] sm:$0xff]
      %v506 = vld [vmem:[%s8 + $0x38] sm:$0xff]
      %v507 = vlaneseq
      %v508 = vshrl.u32 %v507, 7
      %v509 = vsub.s32 0, %v508
      %v510 = vrot.slane %v498, %v509
      %v511 = vmul.f32 %v499, %v510
      %v512 = vmul.f32 %v500, %v510
      %v513 = vmul.f32 %v501, %v510
      %v514 = vmul.f32 %v502, %v510
      %v515 = vmul.f32 %v503, %v510
      %v516 = vmul.f32 %v504, %v510
      %v517 = vmul.f32 %v505, %v510
      %v518 = vmul.f32 %v506, %v510
      %v519 = vsel %vm474, %v511, 0.0
      %520 = vadd.xlane.f32.xlu0 %v519
      %v521 = vpop.xlane.xlu0 %520
      %v522 = vsel %vm474, %v512, 0.0
      %523 = vadd.xlane.f32.xlu0 %v522
      %v524 = vpop.xlane.xlu0 %523
      %v525 = vsel %vm474, %v513, 0.0
      %526 = vadd.xlane.f32.xlu0 %v525
      %v527 = vpop.xlane.xlu0 %526
      %v528 = vsel %vm474, %v514, 0.0
      %529 = vadd.xlane.f32.xlu0 %v528
      %v530 = vpop.xlane.xlu0 %529
      %v531 = vsel %vm474, %v515, 0.0
      %532 = vadd.xlane.f32.xlu0 %v531
      %v533 = vpop.xlane.xlu0 %532
      %v534 = vsel %vm474, %v516, 0.0
      %535 = vadd.xlane.f32.xlu0 %v534
      %v536 = vpop.xlane.xlu0 %535
      %v537 = vsel %vm474, %v517, 0.0
      %538 = vadd.xlane.f32.xlu0 %v537
      %v539 = vpop.xlane.xlu0 %538
      %v540 = vsel %vm474, %v518, 0.0
      %541 = vadd.xlane.f32.xlu0 %v540
      %v542 = vpop.xlane.xlu0 %541
      %v543 = vld [vmem:[%s9] sm:$0xff]
      %v544 = vld [vmem:[%s9 + $0x8] sm:$0xff]
      %v545 = vld [vmem:[%s9 + $0x10] sm:$0xff]
      %v546 = vld [vmem:[%s9 + $0x18] sm:$0xff]
      %v547 = vld [vmem:[%s9 + $0x20] sm:$0xff]
      %v548 = vld [vmem:[%s9 + $0x28] sm:$0xff]
      %v549 = vld [vmem:[%s9 + $0x30] sm:$0xff]
      %v550 = vld [vmem:[%s9 + $0x38] sm:$0xff]
      %v551 = vadd.f32 %v521, %v543
      %v552 = vadd.f32 %v524, %v544
      %v553 = vadd.f32 %v527, %v545
      %v554 = vadd.f32 %v530, %v546
      %v555 = vadd.f32 %v533, %v547
      %v556 = vadd.f32 %v536, %v548
      %v557 = vadd.f32 %v539, %v549
      %v558 = vadd.f32 %v542, %v550
      %v559 = vld [vmem:[%s2] sm:$0xf]
      %v560 = vld [vmem:[%s2 + $0x4] sm:$0xf]
      %v561 = vld [vmem:[%s3] sm:$0xff]
      %v562 = vld [vmem:[%s3 + $0x8] sm:$0xff]
      %v563 = vld [vmem:[%s4] sm:$0xf]
      %v564 = vld [vmem:[%s4 + $0x4] sm:$0xf]
      %v565 = vld [vmem:[%s4 + $0x8] sm:$0xf]
      %v566 = vld [vmem:[%s4 + $0xc] sm:$0xf]
      %v567 = vld [vmem:[%s4 + $0x10] sm:$0xf]
      %v568 = vld [vmem:[%s4 + $0x14] sm:$0xf]
      %v569 = vld [vmem:[%s4 + $0x18] sm:$0xf]
      %v570 = vld [vmem:[%s4 + $0x1c] sm:$0xf]
      %v571 = vld [vmem:[%s5] sm:$0xff]
      %v572 = vld [vmem:[%s5 + $0x8] sm:$0xff]
      %v573 = vld [vmem:[%s5 + $0x10] sm:$0xff]
      %v574 = vld [vmem:[%s5 + $0x18] sm:$0xff]
      %v575 = vld [vmem:[%s5 + $0x20] sm:$0xff]
      %v576 = vld [vmem:[%s5 + $0x28] sm:$0xff]
      %v577 = vld [vmem:[%s5 + $0x30] sm:$0xff]
      %v578 = vld [vmem:[%s5 + $0x38] sm:$0xff]
      loop: start=0, step=1, limit=2
      $region68: #{aff_pallas.1} parent=59 // loop_pre_header
        _
      $region69: #{aff_pallas.1} parent=59 // loop_header
        %s580 = sphi 0, %s584
        %p581 = scmp.ge.s32.totalorder %s580, 2
      $region70: #{aff_pallas.1} parent=59 // loop_header_branch
        %583 = sbr.rel (%p581) target = $region74
      $region71: #{aff_pallas.1} parent=59 // loop_body
        %s585 = smul.u32 %s580, 128
        %s586 = sshra.s32 %s585, 7
        %s587 = sand.u32 %s585, 127
        %s588 = smul.addr %s586, 8
        %s589 = scalar_lea.vmem %s369, %s588
        %v590 = vld [vmem:[%s589] sm:$0xff]
        %v591 = vld [vmem:[%s589 + $0x10] sm:$0xff]
        %v592 = vld [vmem:[%s589 + $0x20] sm:$0xff]
        %v593 = vld [vmem:[%s589 + $0x30] sm:$0xff]
        %v594 = vld [vmem:[%s589 + $0x40] sm:$0xff]
        %v595 = vld [vmem:[%s589 + $0x50] sm:$0xff]
        %v596 = vld [vmem:[%s589 + $0x60] sm:$0xff]
        %v597 = vld [vmem:[%s589 + $0x70] sm:$0xff]
        %s598 = smul.addr %s586, 8
        %s599 = scalar_lea.vmem %s374, %s598
        %v600 = vld [vmem:[%s599] sm:$0xff]
        %v601 = vld [vmem:[%s599 + $0x10] sm:$0xff]
        %v602 = vld [vmem:[%s599 + $0x20] sm:$0xff]
        %v603 = vld [vmem:[%s599 + $0x30] sm:$0xff]
        %v604 = vld [vmem:[%s599 + $0x40] sm:$0xff]
        %v605 = vld [vmem:[%s599 + $0x50] sm:$0xff]
        %v606 = vld [vmem:[%s599 + $0x60] sm:$0xff]
        %v607 = vld [vmem:[%s599 + $0x70] sm:$0xff]
        %v608 = vadd.f32 %v590, %v600
        %v609 = vadd.f32 %v591, %v601
        %v610 = vadd.f32 %v592, %v602
        %v611 = vadd.f32 %v593, %v603
        %v612 = vadd.f32 %v594, %v604
        %v613 = vadd.f32 %v595, %v605
        %v614 = vadd.f32 %v596, %v606
        %v615 = vadd.f32 %v597, %v607
        %v616 = vpack.c.bf16 %v609, %v608
        %v617 = vpack.c.bf16 %v611, %v610
        %v618 = vpack.c.bf16 %v613, %v612
        %v619 = vpack.c.bf16 %v615, %v614
        %621 = vset.pattern.permute.xlu0 0
        %622 = vperm.xlu0 %621, %v561
        %v623 = vpop.permute.xlu0 %622
        %626 = vset.pattern.permute.xlu0 0
        %627 = vperm.xlu0 %626, %v562
        %v628 = vpop.permute.xlu0 %627
        %v632 = vunpack.c.l.b16 %v559
        %v633 = vunpack.c.l.b16 %v560
        %v634 = vpack.c.b16 %v633, %v632
        %vm635 = vcmask 523264
        %v637 = vsel %vm635, %v634, 0
        %639 = vmatprep.subr.bf16.mxu0 0
        %640 = vmatpush1.bf16.msra.mxu0 %v616
        %641 = vmatprep.subr.bf16.mxu0 0
        %642 = vmatpush1.bf16.msra.mxu0 %v617
        %643 = vmatprep.subr.bf16.mxu0 0
        %644 = vmatpush1.bf16.msra.mxu0 %v618
        %645 = vmatprep.subr.bf16.mxu0 0
        %646 = vmatpush1.bf16.msra.mxu0 %v619
        %647 = vmatprep.subr.bf16.mxu0 0
        %648 = vmatpush1.bf16.msra.mxu0 0
        %649 = vmatprep.subr.bf16.mxu0 0
        %650 = vmatpush1.bf16.msra.mxu0 0
        %651 = vmatprep.subr.bf16.mxu0 0
        %652 = vmatpush1.bf16.msra.mxu0 0
        %653 = vmatprep.subr.bf16.mxu0 0
        %654 = vmatpush1.bf16.msra.mxu0 0
        %655 = vmatprep.subr.bf16.mxu0 0
        %656 = vmatpush1.bf16.msra.mxu0 0
        %657 = vmatprep.subr.bf16.mxu0 0
        %658 = vmatpush1.bf16.msra.mxu0 0
        %659 = vmatprep.subr.bf16.mxu0 0
        %660 = vmatpush1.bf16.msra.mxu0 0
        %661 = vmatprep.subr.bf16.mxu0 0
        %662 = vmatpush1.bf16.msra.mxu0 0
        %663 = vmatprep.subr.bf16.mxu0 0
        %664 = vmatpush1.bf16.msra.mxu0 0
        %665 = vmatprep.subr.bf16.mxu0 0
        %666 = vmatpush1.bf16.msra.mxu0 0
        %667 = vmatprep.subr.bf16.mxu0 0
        %668 = vmatpush1.bf16.msra.mxu0 0
        %669 = vmatprep.subr.bf16.mxu0 0
        %670 = vmatpush1.bf16.msra.mxu0 0
        %671 = vmatprep.mubr.bf16.mxu0 0
        %672 = vmatmul.mubr.bf16.gmra.mrb[0].mxu0 %v637
        %v673 = vpop.f32.mrb[0].mxu0
        %v674 = vadd.f32 %v623, %v673
        %v675 = vpop.f32.mrb[0].mxu0
        %v676 = vpop.f32.mrb[0].mxu0
        %v677 = vadd.f32 %v628, %v676
        %v678 = vpop.f32.mrb[0].mxu0
        %679 = vdwg.mxu0
        %v680 = vmax.f32 %v674, 0.0
        %v681 = vmax.f32 %v677, 0.0
        %v682 = vpack.c.bf16 %v681, %v680
        %684 = vset.pattern.permute.xlu0 0
        %685 = vperm.xlu0 %684, %v571
        %v686 = vpop.permute.xlu0 %685
        %689 = vset.pattern.permute.xlu0 0
        %690 = vperm.xlu0 %689, %v572
        %v691 = vpop.permute.xlu0 %690
        %694 = vset.pattern.permute.xlu0 0
        %695 = vperm.xlu0 %694, %v573
        %v696 = vpop.permute.xlu0 %695
        %699 = vset.pattern.permute.xlu0 0
        %700 = vperm.xlu0 %699, %v574
        %v701 = vpop.permute.xlu0 %700
        %704 = vset.pattern.permute.xlu0 0
        %705 = vperm.xlu0 %704, %v575
        %v706 = vpop.permute.xlu0 %705
        %709 = vset.pattern.permute.xlu0 0
        %710 = vperm.xlu0 %709, %v576
        %v711 = vpop.permute.xlu0 %710
        %714 = vset.pattern.permute.xlu0 0
        %715 = vperm.xlu0 %714, %v577
        %v716 = vpop.permute.xlu0 %715
        %719 = vset.pattern.permute.xlu0 0
        %720 = vperm.xlu0 %719, %v578
        %v721 = vpop.permute.xlu0 %720
        %v731 = vunpack.c.l.b16 %v563
        %v732 = vunpack.c.l.b16 %v564
        %v733 = vunpack.c.l.b16 %v565
        %v734 = vunpack.c.l.b16 %v566
        %v735 = vunpack.c.l.b16 %v567
        %v736 = vunpack.c.l.b16 %v568
        %v737 = vunpack.c.l.b16 %v569
        %v738 = vunpack.c.l.b16 %v570
        %v739 = vpack.c.b16 %v732, %v731
        %v740 = vpack.c.b16 %v734, %v733
        %v741 = vpack.c.b16 %v736, %v735
        %v742 = vpack.c.b16 %v738, %v737
        %v744 = vsel %vm474, %v739, 0
        %v747 = vsel %vm474, %v740, 0
        %v750 = vsel %vm474, %v741, 0
        %v753 = vsel %vm474, %v742, 0
        %755 = vmatprep.subr.bf16.mxu0 0
        %756 = vmatpush1.bf16.msra.mxu0 %v682
        %757 = vmatprep.subr.bf16.mxu0 0
        %758 = vmatpush1.bf16.msra.mxu0 0
        %759 = vmatprep.subr.bf16.mxu0 0
        %760 = vmatpush1.bf16.msra.mxu0 0
        %761 = vmatprep.subr.bf16.mxu0 0
        %762 = vmatpush1.bf16.msra.mxu0 0
        %763 = vmatprep.subr.bf16.mxu0 0
        %764 = vmatpush1.bf16.msra.mxu0 0
        %765 = vmatprep.subr.bf16.mxu0 0
        %766 = vmatpush1.bf16.msra.mxu0 0
        %767 = vmatprep.subr.bf16.mxu0 0
        %768 = vmatpush1.bf16.msra.mxu0 0
        %769 = vmatprep.subr.bf16.mxu0 0
        %770 = vmatpush1.bf16.msra.mxu0 0
        %771 = vmatprep.subr.bf16.mxu0 0
        %772 = vmatpush1.bf16.msra.mxu0 0
        %773 = vmatprep.subr.bf16.mxu0 0
        %774 = vmatpush1.bf16.msra.mxu0 0
        %775 = vmatprep.subr.bf16.mxu0 0
        %776 = vmatpush1.bf16.msra.mxu0 0
        %777 = vmatprep.subr.bf16.mxu0 0
        %778 = vmatpush1.bf16.msra.mxu0 0
        %779 = vmatprep.subr.bf16.mxu0 0
        %780 = vmatpush1.bf16.msra.mxu0 0
        %781 = vmatprep.subr.bf16.mxu0 0
        %782 = vmatpush1.bf16.msra.mxu0 0
        %783 = vmatprep.subr.bf16.mxu0 0
        %784 = vmatpush1.bf16.msra.mxu0 0
        %785 = vmatprep.subr.bf16.mxu0 0
        %786 = vmatpush1.bf16.msra.mxu0 0
        %787 = vmatprep.mubr.bf16.mxu0 0
        %788 = vmatmul.mubr.bf16.gmra.mrb[0].mxu0 %v744
        %v789 = vpop.f32.mrb[0].mxu0
        %v790 = vadd.f32 %v686, %v789
        %v791 = vpop.f32.mrb[0].mxu0
        %v792 = vpop.f32.mrb[0].mxu0
        %v793 = vadd.f32 %v691, %v792
        %v794 = vpop.f32.mrb[0].mxu0
        %795 = vmatprep.mubr.bf16.mxu0 0
        %796 = vmatmul.mubr.bf16.gmra.mrb[0].mxu0 %v747
        %v797 = vpop.f32.mrb[0].mxu0
        %v798 = vadd.f32 %v696, %v797
        %v799 = vpop.f32.mrb[0].mxu0
        %v800 = vpop.f32.mrb[0].mxu0
        %v801 = vadd.f32 %v701, %v800
        %v802 = vpop.f32.mrb[0].mxu0
        %803 = vmatprep.mubr.bf16.mxu0 0
        %804 = vmatmul.mubr.bf16.gmra.mrb[0].mxu0 %v750
        %v805 = vpop.f32.mrb[0].mxu0
        %v806 = vadd.f32 %v706, %v805
        %v807 = vpop.f32.mrb[0].mxu0
        %v808 = vpop.f32.mrb[0].mxu0
        %v809 = vadd.f32 %v711, %v808
        %v810 = vpop.f32.mrb[0].mxu0
        %811 = vmatprep.mubr.bf16.mxu0 0
        %812 = vmatmul.mubr.bf16.gmra.mrb[0].mxu0 %v753
        %v813 = vpop.f32.mrb[0].mxu0
        %v814 = vadd.f32 %v716, %v813
        %v815 = vpop.f32.mrb[0].mxu0
        %v816 = vpop.f32.mrb[0].mxu0
        %v817 = vadd.f32 %v721, %v816
        %v818 = vpop.f32.mrb[0].mxu0
        %819 = vdwg.mxu0
        %821 = vset.pattern.permute.xlu0 0
        %822 = vperm.xlu0 %821, %v551
        %v823 = vpop.permute.xlu0 %822
        %826 = vset.pattern.permute.xlu0 0
        %827 = vperm.xlu0 %826, %v552
        %v828 = vpop.permute.xlu0 %827
        %831 = vset.pattern.permute.xlu0 0
        %832 = vperm.xlu0 %831, %v553
        %v833 = vpop.permute.xlu0 %832
        %836 = vset.pattern.permute.xlu0 0
        %837 = vperm.xlu0 %836, %v554
        %v838 = vpop.permute.xlu0 %837
        %841 = vset.pattern.permute.xlu0 0
        %842 = vperm.xlu0 %841, %v555
        %v843 = vpop.permute.xlu0 %842
        %846 = vset.pattern.permute.xlu0 0
        %847 = vperm.xlu0 %846, %v556
        %v848 = vpop.permute.xlu0 %847
        %851 = vset.pattern.permute.xlu0 0
        %852 = vperm.xlu0 %851, %v557
        %v853 = vpop.permute.xlu0 %852
        %856 = vset.pattern.permute.xlu0 0
        %857 = vperm.xlu0 %856, %v558
        %v858 = vpop.permute.xlu0 %857
        %v860 = vadd.f32 %v790, %v823
        %v861 = vadd.f32 %v793, %v828
        %v862 = vadd.f32 %v798, %v833
        %v863 = vadd.f32 %v801, %v838
        %v864 = vadd.f32 %v806, %v843
        %v865 = vadd.f32 %v809, %v848
        %v866 = vadd.f32 %v814, %v853
        %v867 = vadd.f32 %v817, %v858
        %v868 = vsub.f32 0.0, %v860
        %v869 = vsub.f32 0.0, %v861
        %v870 = vsub.f32 0.0, %v862
        %v871 = vsub.f32 0.0, %v863
        %v872 = vsub.f32 0.0, %v864
        %v873 = vsub.f32 0.0, %v865
        %v874 = vsub.f32 0.0, %v866
        %v875 = vsub.f32 0.0, %v867
        %v876 = vmul.f32 %v868, 1.442695
        %v877 = vpow.pop %v876
        %v878 = vmul.f32 %v869, 1.442695
        %v879 = vpow.pop %v878
        %v880 = vmul.f32 %v870, 1.442695
        %v881 = vpow.pop %v880
        %v882 = vmul.f32 %v871, 1.442695
        %v883 = vpow.pop %v882
        %v884 = vmul.f32 %v872, 1.442695
        %v885 = vpow.pop %v884
        %v886 = vmul.f32 %v873, 1.442695
        %v887 = vpow.pop %v886
        %v888 = vmul.f32 %v874, 1.442695
        %v889 = vpow.pop %v888
        %v890 = vmul.f32 %v875, 1.442695
        %v891 = vpow.pop %v890
        %v892 = vadd.f32 %v877, 1.0
        %v893 = vadd.f32 %v879, 1.0
        %v894 = vadd.f32 %v881, 1.0
        %v895 = vadd.f32 %v883, 1.0
        %v896 = vadd.f32 %v885, 1.0
        %v897 = vadd.f32 %v887, 1.0
        %v898 = vadd.f32 %v889, 1.0
        %v899 = vadd.f32 %v891, 1.0
        %v900 = vrcp.pop %v892
        %v901 = vrcp.pop %v893
        %v902 = vrcp.pop %v894
        %v903 = vrcp.pop %v895
        %v904 = vrcp.pop %v896
        %v905 = vrcp.pop %v897
        %v906 = vrcp.pop %v898
        %v907 = vrcp.pop %v899
        %v908 = vsub.f32 %v590, %v600
        %v909 = vsub.f32 %v591, %v601
        %v910 = vsub.f32 %v592, %v602
        %v911 = vsub.f32 %v593, %v603
        %v912 = vsub.f32 %v594, %v604
        %v913 = vsub.f32 %v595, %v605
        %v914 = vsub.f32 %v596, %v606
        %v915 = vsub.f32 %v597, %v607
        %v916 = vmul.f32 %v908, %v900
        %v917 = vmul.f32 %v909, %v901
        %v918 = vmul.f32 %v910, %v902
        %v919 = vmul.f32 %v911, %v903
        %v920 = vmul.f32 %v912, %v904
        %v921 = vmul.f32 %v913, %v905
        %v922 = vmul.f32 %v914, %v906
        %v923 = vmul.f32 %v915, %v907
        %v924 = vadd.f32 %v600, %v916
        %v925 = vadd.f32 %v601, %v917
        %v926 = vadd.f32 %v602, %v918
        %v927 = vadd.f32 %v603, %v919
        %v928 = vadd.f32 %v604, %v920
        %v929 = vadd.f32 %v605, %v921
        %v930 = vadd.f32 %v606, %v922
        %v931 = vadd.f32 %v607, %v923
        %v932 = vmul.f32 %v924, 2.0
        %v933 = vmul.f32 %v925, 2.0
        %v934 = vmul.f32 %v926, 2.0
        %v935 = vmul.f32 %v927, 2.0
        %v936 = vmul.f32 %v928, 2.0
        %v937 = vmul.f32 %v929, 2.0
        %v938 = vmul.f32 %v930, 2.0
        %v939 = vmul.f32 %v931, 2.0
        %s940 = smul.addr %s586, 8
        %s941 = scalar_lea.vmem %s379, %s940
        %942 = vst [vmem:[%s941] sm:$0xff] %v932
        %943 = vst [vmem:[%s941 + $0x10] sm:$0xff] %v933
        %944 = vst [vmem:[%s941 + $0x20] sm:$0xff] %v934
        %945 = vst [vmem:[%s941 + $0x30] sm:$0xff] %v935
        %946 = vst [vmem:[%s941 + $0x40] sm:$0xff] %v936
        %947 = vst [vmem:[%s941 + $0x50] sm:$0xff] %v937
        %948 = vst [vmem:[%s941 + $0x60] sm:$0xff] %v938
        %949 = vst [vmem:[%s941 + $0x70] sm:$0xff] %v939
      $region72: #{aff_pallas.1} parent=59 // loop_footer
        %s584 = sadd.s32 1, %s580
      $region73: #{aff_pallas.1} parent=59 // loop_footer_branch
        %579 = sbr.rel target = $region69
      $region74: #{aff_pallas.1} parent=59 // loop_exit
        _
      %p950 = scmp.lt.s32.totalorder %s21, 1
      %s951 = scalar_select %p950, %s21, 1
      %s952 = smul.addr %s951, 16
      %s953 = smul.addr %s952, 8
      %s954 = scalar_lea.vmem %s10, %s953
      // Predicated region
      $region75: #{aff_pallas.1} parent=59 // pred_check
        %p955 = pneg %p259
      $region76: #{aff_pallas.1} parent=59 // pred_check_branch
        %957 = sbr.rel (%p955) target = $region78
      $region77: #{aff_pallas.1} parent=59 // pred_region
        _
      $region78: #{aff_pallas.1} parent=59 // pred_fallthru
        _
    $region60: #{aff_pallas.1} parent=5 // pred_fallthru
      _
    %p958 = scmp.le.s32.totalorder 2, %s16
    // Predicated region
    $region79: #{aff_pallas.1} parent=5 // pred_check
      %p959 = pneg %p958
    $region80: #{aff_pallas.1} parent=5 // pred_check_branch
      %961 = sbr.rel (%p959) target = $region82
    $region81: #{aff_pallas.1} parent=5 // pred_region
      %s962 = ssub.s32 %s16, 2
      // Predicated region
      $region83: #{aff_pallas.1} parent=81 // pred_check
        %p963 = pneg %p265
      $region84: #{aff_pallas.1} parent=81 // pred_check_branch
        %965 = sbr.rel (%p963) target = $region86
      $region85: #{aff_pallas.1} parent=81 // pred_region
        %p966 = scmp.lt.s32.totalorder %s22, 1
        %s967 = scalar_select %p966, %s22, 1
        %s968 = smul.addr %s967, 16
        %s969 = smul.addr %s968, 8
        %s970 = scalar_lea.vmem %s10, %s969
      $region86: #{aff_pallas.1} parent=81 // pred_fallthru
        _
    $region82: #{aff_pallas.1} parent=5 // pred_fallthru
      _
  $region6: #{aff_pallas.1} parent=0 // loop_footer
    %s20 = sadd.s32 1, %s16
  $region7: #{aff_pallas.1} parent=0 // loop_footer_branch
    %15 = sbr.rel target = $region3
  $region8: #{aff_pallas.1} parent=0 // loop_exit
    _

</llo_original>
